<compile_context>
chip_gen: v5e
topology: v5e:2x2
jax: 0.10.0
libtpu: 0.0.40
codegen_flags: <defaults>
</compile_context>

<pallas_src>
import jax
import jax.numpy as jnp
from jax import lax
from jax.experimental import pallas as pl
from jax.experimental.pallas import tpu as pltpu


def _make_kernel(M, N, TM, TH):
    """Kernel body with image height M, width N, row tile TM and halo block
    height TH baked in as Python constants."""

    def kernel(y_ref, w_ref, yh_ref, wh_ref, im_ref, out_ref):
        i = pl.program_id(0)

        yw0 = y_ref[0] * w_ref[0]            # (TM, N) horizontal dual * weight
        yw1 = y_ref[1] * w_ref[1]            # (TM, N) vertical   dual * weight

        # Cheap 1-D boundary iotas (no full (TM, N) int32 temporaries).
        col = lax.broadcasted_iota(jnp.int32, (1, N), 1)       # lane index
        lrow = lax.broadcasted_iota(jnp.int32, (TM, 1), 0)     # local row in tile
        grow = lrow + i * TM                                   # global row index

        # ---- horizontal backward divergence ----
        #   d_h[:, j] = yw0[:, j]*[j < N-1] - yw0[:, j-1]*[j >= 1]
        yw0_left = pltpu.roll(yw0, shift=1, axis=1)            # [:, j] = yw0[:, j-1]
        d_h = jnp.where(col < N - 1, yw0, 0.0) - jnp.where(col >= 1, yw0_left, 0.0)

        # ---- vertical backward divergence ----
        # The row above the tile arrives as its own small halo block (last row
        # of yh/wh); for the first tile it is masked out by `grow >= 1`.
        halo = yh_ref[0, TH - 1:TH, :] * wh_ref[0, TH - 1:TH, :]   # (1, N)
        yw1_up = pltpu.roll(yw1, shift=1, axis=0)                  # [r] = yw1[r-1]
        yw1_up = jnp.where(lrow == 0, halo, yw1_up)
        d_v = (jnp.where(grow < M - 1, yw1, 0.0)
               - jnp.where((grow >= 1) & (grow < M), yw1_up, 0.0))

        # Rows >= M of a partial last tile are undefined -> mask the residual.
        diff = im_ref[0] - (d_h + d_v)
        sq = jnp.where(grow < M, diff * diff, 0.0)

        # Per-tile lane partials: sublane reduce only, lane-dense (1, 1, N) store.
        out_ref[...] = jnp.sum(sq, axis=0, keepdims=True)[None]

    return kernel


def dual_energy_rof(y, im_obs, w, *, tm=None):
    """Dual energy of the ROF problem.

    y:      [2, M, N]           dual variable
    im_obs: [1, M, N] or [M, N] observed image
    w:      [2, M, N]           weights
    returns scalar float32  (= -0.5 * sum((im_obs - div_w(y))**2))
    """
    y = jnp.asarray(y, jnp.float32)
    w = jnp.asarray(w, jnp.float32)
    im = jnp.asarray(im_obs, jnp.float32)
    im3 = im if im.ndim == 3 else im[None]       # keep 3-D: no plane-slice copy

    _, M, N = y.shape
    assert y.shape == (2, M, N) and w.shape == (2, M, N) and im3.shape == (1, M, N)
    assert M >= 2 and N >= 2

    # ---- generation-aware VMEM budget (v7x: 64 MiB, v5e/v6e: 128 MiB) ----
    try:
        info = pltpu.get_tpu_info()
        vmem_cap = int(getattr(info, "vmem_capacity_bytes", 64 << 20))
    except Exception:  # pragma: no cover - conservative fallback
        vmem_cap = 64 << 20

    # ~16 live f32 (TM, N) planes: double-buffered {y(2), w(2), im(1)} inputs
    # plus ~6 elementwise/roll temporaries -> budget half of VMEM for them.
    tm_cap = max(8, (((vmem_cap // 2) // (64 * N)) // 8) * 8)
    if tm is None:
        TM = min(2048, tm_cap)
    else:
        TM = max(8, (int(tm) // 8) * 8)
        TM = min(TM, tm_cap)
    if TM >= M:
        TM = M                                   # single full-extent row tile
    TH = 8 if M >= 8 else M                      # halo block height (sublane aligned)

    num_tiles = -(-M // TM)                      # partial last block, no padding
    tpb = max(TM // TH, 1)                       # row tile size in halo-block units

    y_spec = pl.BlockSpec((2, TM, N), lambda i: (0, i, 0))
    w_spec = pl.BlockSpec((2, TM, N), lambda i: (0, i, 0))
    # Halo: 8 rows of plane 1 ending at global row i*TM - 1 (clamped to 0; the
    # i == 0 case is masked in-kernel by the grow >= 1 condition).
    halo_spec = pl.BlockSpec(
        (1, TH, N), lambda i: (1, jnp.maximum(i * tpb - 1, 0), 0))
    im_spec = pl.BlockSpec((1, TM, N), lambda i: (0, i, 0))
    out_spec = pl.BlockSpec((1, 1, N), lambda i: (i, 0, 0))

    blk_set = (5 * TM + 2 * TH) * N * 4          # one double-buffer input set
    needed = 2 * blk_set + 8 * TM * N * 4 + 2 * 8 * N * 4 + (4 << 20)
    vmem_limit = int(max(32 << 20, min(needed, vmem_cap - (8 << 20))))

    partials = pl.pallas_call(
        _make_kernel(M, N, TM, TH),
        out_shape=jax.ShapeDtypeStruct((num_tiles, 1, N), jnp.float32),
        grid=(num_tiles,),
        in_specs=[y_spec, w_spec, halo_spec, halo_spec, im_spec],
        out_specs=out_spec,
        compiler_params=pltpu.CompilerParams(
            dimension_semantics=("parallel",),   # halo via DMA -> no carry, both TCs on v7x
            vmem_limit_bytes=vmem_limit,
        ),
    )(y, w, y, w, im3)

    return -0.5 * jnp.sum(partials)


def _reference(y, im_obs, w):
    """Pure-JAX mirror of the PyTorch DualEnergyROF forward."""
    yw = w * y
    _, M, N = y.shape
    d_h = jnp.zeros((1, M, N), jnp.float32)
    d_h = d_h.at[0, :, 0].set(yw[0, :, 0])
    d_h = d_h.at[0, :, 1:-1].set(yw[0, :, 1:-1] - yw[0, :, :-2])
    d_h = d_h.at[0, :, -1].set(-yw[0, :, -2])
    d_v = jnp.zeros((1, M, N), jnp.float32)
    d_v = d_v.at[0, 0, :].set(yw[1, 0, :])
    d_v = d_v.at[0, 1:-1, :].set(yw[1, 1:-1, :] - yw[1, :-2, :])
    d_v = d_v.at[0, -1, :].set(-yw[1, -2, :])
    div = d_h + d_v
    im = im_obs if im_obs.ndim == 3 else im_obs[None]
    return jnp.sum(-0.5 * (im - div) ** 2)


if __name__ == "__main__":
    key = jax.random.PRNGKey(0)

    configs = [
        (16, 16, None),    # tiny, single full-extent tile
        (48, 128, 16),     # multi-tile: exercises the halo blocks
        (40, 128, 16),     # non-divisible M: exercises the partial-last-tile mask
        (100, 256, 24),    # more tiles + partial last tile
    ]
    for M, N, tm in configs:
        kk = jax.random.fold_in(key, M * 1000 + N)
        ky, kw, ki = jax.random.split(kk, 3)
        y = jax.random.normal(ky, (2, M, N), dtype=jnp.float32)
        w = jax.random.uniform(kw, (2, M, N), dtype=jnp.float32, minval=0.5, maxval=1.5)
        im_obs = jax.random.normal(ki, (1, M, N), dtype=jnp.float32)

        out = jax.block_until_ready(dual_energy_rof(y, im_obs, w, tm=tm))
        ref = _reference(y, im_obs, w)
        assert jnp.allclose(out, ref, rtol=2e-4, atol=1e-2), (
            f"mismatch at {M}x{N}: kernel={out} ref={ref}")

    print("KERNEL_OK")
</pallas_src>

<mosaic_0001>
module attributes {stable_mosaic.version = 11 : i64} {
  func.func @kernel(%arg0: i32, %arg1: memref<2x16x16xf32, #tpu.memory_space<vmem>>, %arg2: memref<2x16x16xf32, #tpu.memory_space<vmem>>, %arg3: memref<1x8x16xf32, #tpu.memory_space<vmem>>, %arg4: memref<1x8x16xf32, #tpu.memory_space<vmem>>, %arg5: memref<1x16x16xf32, #tpu.memory_space<vmem>>, %arg6: memref<1x1x16xf32, #tpu.memory_space<vmem>>) attributes {dimension_semantics = [#tpu.dimension_semantics<parallel>], iteration_bounds = array<i64: 1>, scalar_prefetch = 0 : i64, scratch_operands = 0 : i64, tpu.core_type = #tpu.core_type<tc>, window_params = [{transform_indices = @transform_0, window_bounds = array<i64: 2, 16, 16>}, {transform_indices = @transform_1, window_bounds = array<i64: 2, 16, 16>}, {transform_indices = @transform_2, window_bounds = array<i64: 1, 8, 16>}, {transform_indices = @transform_3, window_bounds = array<i64: 1, 8, 16>}, {transform_indices = @transform_4, window_bounds = array<i64: 1, 16, 16>}, {transform_indices = @transform_5, window_bounds = array<i64: 1, 1, 16>}]} {
    %c0 = arith.constant 0 : index
    %c0_0 = arith.constant 0 : index
    %c0_1 = arith.constant 0 : index
    %0 = vector.load %arg1[%c0, %c0_0, %c0_1] : memref<2x16x16xf32, #tpu.memory_space<vmem>>, vector<1x16x16xf32>
    %1 = vector.shape_cast %0 : vector<1x16x16xf32> to vector<16x16xf32>
    %c0_2 = arith.constant 0 : index
    %c0_3 = arith.constant 0 : index
    %c0_4 = arith.constant 0 : index
    %2 = vector.load %arg2[%c0_2, %c0_3, %c0_4] : memref<2x16x16xf32, #tpu.memory_space<vmem>>, vector<1x16x16xf32>
    %3 = vector.shape_cast %2 : vector<1x16x16xf32> to vector<16x16xf32>
    %4 = arith.mulf %1, %3 : vector<16x16xf32>
    %c1 = arith.constant 1 : index
    %c0_5 = arith.constant 0 : index
    %c0_6 = arith.constant 0 : index
    %5 = vector.load %arg1[%c1, %c0_5, %c0_6] : memref<2x16x16xf32, #tpu.memory_space<vmem>>, vector<1x16x16xf32>
    %6 = vector.shape_cast %5 : vector<1x16x16xf32> to vector<16x16xf32>
    %c1_7 = arith.constant 1 : index
    %c0_8 = arith.constant 0 : index
    %c0_9 = arith.constant 0 : index
    %7 = vector.load %arg2[%c1_7, %c0_8, %c0_9] : memref<2x16x16xf32, #tpu.memory_space<vmem>>, vector<1x16x16xf32>
    %8 = vector.shape_cast %7 : vector<1x16x16xf32> to vector<16x16xf32>
    %9 = arith.mulf %6, %8 : vector<16x16xf32>
    %10 = tpu.iota {dimensions = array<i32: 1>} : vector<1x16xi32>
    %11 = tpu.iota {dimensions = array<i32: 0>} : vector<16x1xi32>
    %c16_i32 = arith.constant 16 : i32
    %12 = arith.muli %arg0, %c16_i32 : i32
    %13 = vector.broadcast %12 : i32 to vector<16x1xi32>
    %14 = arith.addi %11, %13 : vector<16x1xi32>
    %c1_i32 = arith.constant 1 : i32
    %15 = tpu.dynamic_rotate %4 by %c1_i32 dim 1 : vector<16x16xf32>, i32 -> vector<16x16xf32>
    %c15_i32 = arith.constant 15 : i32
    %16 = vector.broadcast %c15_i32 : i32 to vector<1x16xi32>
    %17 = arith.cmpi slt, %10, %16 : vector<1x16xi32>
    %cst = arith.constant 0.000000e+00 : f32
    %18 = vector.shape_cast %17 : vector<1x16xi1> to vector<1x16xi1>
    %19 = vector.broadcast %18 : vector<1x16xi1> to vector<16x16xi1>
    %20 = vector.broadcast %cst : f32 to vector<16x16xf32>
    %21 = arith.select %19, %4, %20 : vector<16x16xi1>, vector<16x16xf32>
    %c1_i32_10 = arith.constant 1 : i32
    %22 = vector.broadcast %c1_i32_10 : i32 to vector<1x16xi32>
    %23 = arith.cmpi sge, %10, %22 : vector<1x16xi32>
    %cst_11 = arith.constant 0.000000e+00 : f32
    %24 = vector.shape_cast %23 : vector<1x16xi1> to vector<1x16xi1>
    %25 = vector.broadcast %24 : vector<1x16xi1> to vector<16x16xi1>
    %26 = vector.broadcast %cst_11 : f32 to vector<16x16xf32>
    %27 = arith.select %25, %15, %26 : vector<16x16xi1>, vector<16x16xf32>
    %28 = arith.subf %21, %27 : vector<16x16xf32>
    %c0_12 = arith.constant 0 : index
    %c7 = arith.constant 7 : index
    %c0_13 = arith.constant 0 : index
    %29 = vector.load %arg3[%c0_12, %c7, %c0_13] : memref<1x8x16xf32, #tpu.memory_space<vmem>>, vector<1x1x16xf32>
    %30 = vector.shape_cast %29 : vector<1x1x16xf32> to vector<1x16xf32>
    %c0_14 = arith.constant 0 : index
    %c7_15 = arith.constant 7 : index
    %c0_16 = arith.constant 0 : index
    %31 = vector.load %arg4[%c0_14, %c7_15, %c0_16] : memref<1x8x16xf32, #tpu.memory_space<vmem>>, vector<1x1x16xf32>
    %32 = vector.shape_cast %31 : vector<1x1x16xf32> to vector<1x16xf32>
    %33 = arith.mulf %30, %32 : vector<1x16xf32>
    %c1_i32_17 = arith.constant 1 : i32
    %34 = tpu.dynamic_rotate %9 by %c1_i32_17 dim 0 : vector<16x16xf32>, i32 -> vector<16x16xf32>
    %c0_i32 = arith.constant 0 : i32
    %35 = vector.broadcast %c0_i32 : i32 to vector<16x1xi32>
    %36 = arith.cmpi eq, %11, %35 : vector<16x1xi32>
    %37 = vector.shape_cast %36 : vector<16x1xi1> to vector<16x1xi1>
    %38 = vector.broadcast %37 : vector<16x1xi1> to vector<16x16xi1>
    %39 = vector.shape_cast %33 : vector<1x16xf32> to vector<1x16xf32>
    %40 = vector.broadcast %39 : vector<1x16xf32> to vector<16x16xf32>
    %41 = arith.select %38, %40, %34 : vector<16x16xi1>, vector<16x16xf32>
    %c15_i32_18 = arith.constant 15 : i32
    %42 = vector.broadcast %c15_i32_18 : i32 to vector<16x1xi32>
    %43 = arith.cmpi slt, %14, %42 : vector<16x1xi32>
    %cst_19 = arith.constant 0.000000e+00 : f32
    %44 = vector.shape_cast %43 : vector<16x1xi1> to vector<16x1xi1>
    %45 = vector.broadcast %44 : vector<16x1xi1> to vector<16x16xi1>
    %46 = vector.broadcast %cst_19 : f32 to vector<16x16xf32>
    %47 = arith.select %45, %9, %46 : vector<16x16xi1>, vector<16x16xf32>
    %c1_i32_20 = arith.constant 1 : i32
    %48 = vector.broadcast %c1_i32_20 : i32 to vector<16x1xi32>
    %49 = arith.cmpi sge, %14, %48 : vector<16x1xi32>
    %c16_i32_21 = arith.constant 16 : i32
    %50 = vector.broadcast %c16_i32_21 : i32 to vector<16x1xi32>
    %51 = arith.cmpi slt, %14, %50 : vector<16x1xi32>
    %52 = arith.andi %49, %51 : vector<16x1xi1>
    %cst_22 = arith.constant 0.000000e+00 : f32
    %53 = vector.shape_cast %52 : vector<16x1xi1> to vector<16x1xi1>
    %54 = vector.broadcast %53 : vector<16x1xi1> to vector<16x16xi1>
    %55 = vector.broadcast %cst_22 : f32 to vector<16x16xf32>
    %56 = arith.select %54, %41, %55 : vector<16x16xi1>, vector<16x16xf32>
    %57 = arith.subf %47, %56 : vector<16x16xf32>
    %c0_23 = arith.constant 0 : index
    %c0_24 = arith.constant 0 : index
    %c0_25 = arith.constant 0 : index
    %58 = vector.load %arg5[%c0_23, %c0_24, %c0_25] : memref<1x16x16xf32, #tpu.memory_space<vmem>>, vector<1x16x16xf32>
    %59 = vector.shape_cast %58 : vector<1x16x16xf32> to vector<16x16xf32>
    %60 = arith.addf %28, %57 : vector<16x16xf32>
    %61 = arith.subf %59, %60 : vector<16x16xf32>
    %c16_i32_26 = arith.constant 16 : i32
    %62 = vector.broadcast %c16_i32_26 : i32 to vector<16x1xi32>
    %63 = arith.cmpi slt, %14, %62 : vector<16x1xi32>
    %64 = arith.mulf %61, %61 : vector<16x16xf32>
    %cst_27 = arith.constant 0.000000e+00 : f32
    %65 = vector.shape_cast %63 : vector<16x1xi1> to vector<16x1xi1>
    %66 = vector.broadcast %65 : vector<16x1xi1> to vector<16x16xi1>
    %67 = vector.broadcast %cst_27 : f32 to vector<16x16xf32>
    %68 = arith.select %66, %64, %67 : vector<16x16xi1>, vector<16x16xf32>
    %cst_28 = arith.constant dense<0.000000e+00> : vector<16xf32>
    %69 = vector.multi_reduction <add>, %68, %cst_28 [0] : vector<16x16xf32> to vector<16xf32>
    %70 = vector.shape_cast %69 : vector<16xf32> to vector<1x16xf32>
    %71 = vector.shape_cast %70 : vector<1x16xf32> to vector<1x1x16xf32>
    %c0_29 = arith.constant 0 : index
    %c0_30 = arith.constant 0 : index
    %c0_31 = arith.constant 0 : index
    %72 = vector.load %arg6[%c0_29, %c0_30, %c0_31] : memref<1x1x16xf32, #tpu.memory_space<vmem>>, vector<1x1x16xf32>
    tpu.vector_store %arg6[%c0_29, %c0_30, %c0_31], %71 {strides = array<i32>} : memref<1x1x16xf32, #tpu.memory_space<vmem>>, vector<1x1x16xf32>,
    return
  }
  func.func @transform_0(%arg0: i32) -> (i32, i32, i32) {
    %c0_i32 = arith.constant 0 : i32
    %c0_i32_0 = arith.constant 0 : i32
    %c0_i32_1 = arith.constant 0 : i32
    return %c0_i32, %arg0, %c0_i32_0 : i32, i32, i32
  }
  func.func @transform_1(%arg0: i32) -> (i32, i32, i32) {
    %c0_i32 = arith.constant 0 : i32
    %c0_i32_0 = arith.constant 0 : i32
    %c0_i32_1 = arith.constant 0 : i32
    return %c0_i32, %arg0, %c0_i32_0 : i32, i32, i32
  }
  func.func @transform_2(%arg0: i32) -> (i32, i32, i32) {
    %c2_i32 = arith.constant 2 : i32
    %0 = arith.muli %arg0, %c2_i32 : i32
    %c1_i32 = arith.constant 1 : i32
    %1 = arith.subi %0, %c1_i32 : i32
    %c0_i32 = arith.constant 0 : i32
    %2 = arith.maxsi %1, %c0_i32 : i32
    %c1_i32_0 = arith.constant 1 : i32
    %c0_i32_1 = arith.constant 0 : i32
    %c0_i32_2 = arith.constant 0 : i32
    return %c1_i32_0, %2, %c0_i32_1 : i32, i32, i32
  }
  func.func @transform_3(%arg0: i32) -> (i32, i32, i32) {
    %c2_i32 = arith.constant 2 : i32
    %0 = arith.muli %arg0, %c2_i32 : i32
    %c1_i32 = arith.constant 1 : i32
    %1 = arith.subi %0, %c1_i32 : i32
    %c0_i32 = arith.constant 0 : i32
    %2 = arith.maxsi %1, %c0_i32 : i32
    %c1_i32_0 = arith.constant 1 : i32
    %c0_i32_1 = arith.constant 0 : i32
    %c0_i32_2 = arith.constant 0 : i32
    return %c1_i32_0, %2, %c0_i32_1 : i32, i32, i32
  }
  func.func @transform_4(%arg0: i32) -> (i32, i32, i32) {
    %c0_i32 = arith.constant 0 : i32
    %c0_i32_0 = arith.constant 0 : i32
    %c0_i32_1 = arith.constant 0 : i32
    return %c0_i32, %arg0, %c0_i32_0 : i32, i32, i32
  }
  func.func @transform_5(%arg0: i32) -> (i32, i32, i32) {
    %c0_i32 = arith.constant 0 : i32
    %c0_i32_0 = arith.constant 0 : i32
    %c0_i32_1 = arith.constant 0 : i32
    return %arg0, %c0_i32, %c0_i32_0 : i32, i32, i32
  }
}

</mosaic_0001>

<llo_original>
// kernel: tpu_custom_call.1
$region0: #{tpu_custom_call.1}
  #allocation0 [shape = 'u32[]', space=smem, size = 0x4, offset = 0x4, fixed_abs, tag = 'smem constant byte address 0x4 - core index']
  #allocation1 [shape = 'u32[72,128]{1,0:T(1,128)}', space=vmem, size = 0x9000, scoped, tag = 'internal scratch']
  %s0 = inlined_call_operand.hbm [shape: f32[2,16,16], index: 0, kind: input, shape index: {}]
  %s1 = inlined_call_operand.hbm [shape: f32[2,16,16], index: 1, kind: input, shape index: {}]
  %s2 = inlined_call_operand.hbm [shape: f32[2,16,16], index: 2, kind: input, shape index: {}]
  %s3 = inlined_call_operand.hbm [shape: f32[2,16,16], index: 3, kind: input, shape index: {}]
  %s4 = inlined_call_operand.hbm [shape: f32[1,16,16], index: 4, kind: input, shape index: {}]
  %s5 = inlined_call_operand.hbm [shape: f32[1,1,16], index: 5, kind: output, shape index: {}]
  %s6 = sld [smem:[#allocation0]]
  $region50: #{tpu_custom_call.1} parent=0
    _
  %s8 = ssub.s32 1, %s6
  %s9 = scalar_select 0, %s8, %s6
  $region1: #{tpu_custom_call.1} parent=0
    #allocation2 [shape = 'u8[16384]{0}', space=vmem, size = 0x4000, scoped, tag = 'input window, operand 0, single buffered']
    #allocation3 [shape = 's32[1]{0}', space=sflag, size = 0x4, scoped, tag = 'scoped memory for tpu_custom_call.1']
    #allocation4 [shape = 's32[1]{0}', space=sflag, size = 0x4, scoped, tag = 'scoped memory for tpu_custom_call.1']
    #allocation5 [shape = 'u8[16384]{0}', space=vmem, size = 0x4000, scoped, tag = 'input window, operand 1, single buffered']
    #allocation6 [shape = 's32[1]{0}', space=sflag, size = 0x4, scoped, tag = 'scoped memory for tpu_custom_call.1']
    #allocation7 [shape = 'u8[4096]{0}', space=vmem, size = 0x1000, scoped, tag = 'input window, operand 2, single buffered']
    #allocation8 [shape = 'u8[4096]{0}', space=vmem, size = 0x1000, scoped, tag = 'input window, operand 3, single buffered']
    #allocation9 [shape = 's32[1]{0}', space=sflag, size = 0x4, scoped, tag = 'scoped memory for tpu_custom_call.1']
    #allocation10 [shape = 'u8[8192]{0}', space=vmem, size = 0x2000, scoped, tag = 'input window, operand 4, single buffered']
    #allocation11 [shape = 'u8[512]{0}', space=vmem, size = 0x400, scoped, tag = 'output window, operand 0, single buffered']
    %10 = vsyncpa [#allocation3], 0
    %11 = vsyncpa [#allocation6], 0
    %12 = vsyncpa [#allocation9], 0
    %13 = vsyncpa [#allocation4], 0
    // Predicated region
    $region2: #{tpu_custom_call.1} parent=1 // pred_check
      _
    $region3: #{tpu_custom_call.1} parent=1 // pred_check_branch
      %15 = sbr.rel (0) target = $region5
    $region4: #{tpu_custom_call.1} parent=1 // pred_region
      %17 = vsyncadd [#allocation3], 0
      %s18 = sshll.u32 %s0, 4
      %s19 = int_to_ptr.hbm [resolvable:$true] %s18
      %s20 = sshll.u32 [#allocation2], 4
      %s21 = int_to_ptr.vmem [resolvable:$true] %s20
      %26 = dma.hbm_to_vmem [thread:$0]  %s19, 512, %s21, [#allocation3], 128, 128, 8
    $region5: #{tpu_custom_call.1} parent=1 // pred_fallthru
      _
    // Predicated region
    $region6: #{tpu_custom_call.1} parent=1 // pred_check
      _
    $region7: #{tpu_custom_call.1} parent=1 // pred_check_branch
      %28 = sbr.rel (0) target = $region9
    $region8: #{tpu_custom_call.1} parent=1 // pred_region
      %30 = vsyncadd [#allocation6], 0
      %s31 = sshll.u32 %s1, 4
      %s32 = int_to_ptr.hbm [resolvable:$true] %s31
      %s33 = sshll.u32 [#allocation5], 4
      %s34 = int_to_ptr.vmem [resolvable:$true] %s33
      %39 = dma.hbm_to_vmem [thread:$0]  %s32, 512, %s34, [#allocation6], 128, 128, 8
    $region9: #{tpu_custom_call.1} parent=1 // pred_fallthru
      _
    // Predicated region
    $region10: #{tpu_custom_call.1} parent=1 // pred_check
      _
    $region11: #{tpu_custom_call.1} parent=1 // pred_check_branch
      %41 = sbr.rel (0) target = $region13
    $region12: #{tpu_custom_call.1} parent=1 // pred_region
      %s42 = smul.u32 0, 2
      %s43 = ssub.s32 %s42, 1
      %p44 = scmp.gt.s32.totalorder %s43, 0
      %s45 = scalar_select %p44, %s43, 0
      %47 = vsyncadd [#allocation6], 0
      %s48 = sadd.s32 %s45, 2
      %s49 = smul.addr %s48, 8
      %s50 = scalar_lea.hbm %s2, %s49
      %s52 = sshll.u32 %s50, 4
      %s53 = int_to_ptr.hbm [resolvable:$true] %s52
      %s54 = sshll.u32 [#allocation7], 4
      %s55 = int_to_ptr.vmem [resolvable:$true] %s54
      %57 = dma.hbm_to_vmem [thread:$0]  %s53, 128, %s55, [#allocation6]
    $region13: #{tpu_custom_call.1} parent=1 // pred_fallthru
      _
    // Predicated region
    $region14: #{tpu_custom_call.1} parent=1 // pred_check
      _
    $region15: #{tpu_custom_call.1} parent=1 // pred_check_branch
      %59 = sbr.rel (0) target = $region17
    $region16: #{tpu_custom_call.1} parent=1 // pred_region
      %s60 = smul.u32 0, 2
      %s61 = ssub.s32 %s60, 1
      %p62 = scmp.gt.s32.totalorder %s61, 0
      %s63 = scalar_select %p62, %s61, 0
      %65 = vsyncadd [#allocation9], 0
      %s66 = sadd.s32 %s63, 2
      %s67 = smul.addr %s66, 8
      %s68 = scalar_lea.hbm %s3, %s67
      %s70 = sshll.u32 %s68, 4
      %s71 = int_to_ptr.hbm [resolvable:$true] %s70
      %s72 = sshll.u32 [#allocation8], 4
      %s73 = int_to_ptr.vmem [resolvable:$true] %s72
      %75 = dma.hbm_to_vmem [thread:$0]  %s71, 128, %s73, [#allocation9]
    $region17: #{tpu_custom_call.1} parent=1 // pred_fallthru
      _
    // Predicated region
    $region18: #{tpu_custom_call.1} parent=1 // pred_check
      _
    $region19: #{tpu_custom_call.1} parent=1 // pred_check_branch
      %77 = sbr.rel (0) target = $region21
    $region20: #{tpu_custom_call.1} parent=1 // pred_region
      %79 = vsyncadd [#allocation9], 0
      %s80 = sshll.u32 %s4, 4
      %s81 = int_to_ptr.hbm [resolvable:$true] %s80
      %s82 = sshll.u32 [#allocation10], 4
      %s83 = int_to_ptr.vmem [resolvable:$true] %s82
      %88 = dma.hbm_to_vmem [thread:$0]  %s81, 256, %s83, [#allocation9], 128, 128, 8
    $region21: #{tpu_custom_call.1} parent=1 // pred_fallthru
      _
    // Predicated region
    $region22: #{tpu_custom_call.1} parent=1 // pred_check
      _
    $region23: #{tpu_custom_call.1} parent=1 // pred_check_branch
      %90 = sbr.rel (0) target = $region25
    $region24: #{tpu_custom_call.1} parent=1 // pred_region
      %92 = dma.done [#allocation3], 512
    $region25: #{tpu_custom_call.1} parent=1 // pred_fallthru
      _
    // Predicated region
    $region26: #{tpu_custom_call.1} parent=1 // pred_check
      _
    $region27: #{tpu_custom_call.1} parent=1 // pred_check_branch
      %94 = sbr.rel (0) target = $region29
    $region28: #{tpu_custom_call.1} parent=1 // pred_region
      %96 = dma.done [#allocation6], 512
    $region29: #{tpu_custom_call.1} parent=1 // pred_fallthru
      _
    // Predicated region
    $region30: #{tpu_custom_call.1} parent=1 // pred_check
      _
    $region31: #{tpu_custom_call.1} parent=1 // pred_check_branch
      %98 = sbr.rel (0) target = $region33
    $region32: #{tpu_custom_call.1} parent=1 // pred_region
      %100 = dma.done [#allocation6], 128
    $region33: #{tpu_custom_call.1} parent=1 // pred_fallthru
      _
    // Predicated region
    $region34: #{tpu_custom_call.1} parent=1 // pred_check
      _
    $region35: #{tpu_custom_call.1} parent=1 // pred_check_branch
      %102 = sbr.rel (0) target = $region37
    $region36: #{tpu_custom_call.1} parent=1 // pred_region
      %104 = dma.done [#allocation9], 128
    $region37: #{tpu_custom_call.1} parent=1 // pred_fallthru
      _
    // Predicated region
    $region38: #{tpu_custom_call.1} parent=1 // pred_check
      _
    $region39: #{tpu_custom_call.1} parent=1 // pred_check_branch
      %106 = sbr.rel (0) target = $region41
    $region40: #{tpu_custom_call.1} parent=1 // pred_region
      %108 = dma.done [#allocation9], 256
    $region41: #{tpu_custom_call.1} parent=1 // pred_fallthru
      _
    %s109 = smul.u32 0, 2
    %s110 = ssub.s32 %s109, 1
    %p111 = scmp.gt.s32.totalorder %s110, 0
    %s112 = scalar_select %p111, %s110, 0
    %s113 = smul.u32 0, 2
    %s114 = ssub.s32 %s113, 1
    %p115 = scmp.gt.s32.totalorder %s114, 0
    %s116 = scalar_select %p115, %s114, 0
    %v117 = vld [vmem:[#allocation2] sm:$0xff]
    %v118 = vld [vmem:[#allocation2 + $0x8] sm:$0xff]
    %v119 = vld [vmem:[#allocation5] sm:$0xff]
    %v120 = vld [vmem:[#allocation5 + $0x8] sm:$0xff]
    %v121 = vmul.f32 %v117, %v119
    %v122 = vmul.f32 %v118, %v120
    %s123 = scalar_lea.vmem [#allocation2], 16
    %v124 = vld [vmem:[%s123] sm:$0xff]
    %v125 = vld [vmem:[%s123 + $0x8] sm:$0xff]
    %s126 = scalar_lea.vmem [#allocation5], 16
    %v127 = vld [vmem:[%s126] sm:$0xff]
    %v128 = vld [vmem:[%s126 + $0x8] sm:$0xff]
    %v129 = vmul.f32 %v124, %v127
    %v130 = vmul.f32 %v125, %v128
    %v131 = vlaneseq
    %v132 = vand.u32 %v131, 127
    %v133 = vlaneseq
    %v134 = vshrl.u32 %v133, 7
    %v135 = vadd.s32 %v134, 8
    %s136 = smul.u32 0, 16
    %v137 = vstv %s136
    %v138 = vadd.s32 %v134, %v137
    %v139 = vadd.s32 %v135, %v137
    %vm140 = vcmask 1047680
    %141 = vrot.lane.b32.xlu0 %v121, 16
    %v142 = vpop.permute.xlu0 %141
    %v143 = vsel %vm140, %v142, %v121
    %144 = vrot.lane.b32.xlu0 %v122, 16
    %v145 = vpop.permute.xlu0 %144
    %v146 = vsel %vm140, %v145, %v122
    %147 = vrot.lane.b32.xlu0 %v143, 16
    %v148 = vpop.permute.xlu0 %147
    %149 = vrot.lane.b32.xlu0 %v146, 16
    %v150 = vpop.permute.xlu0 %149
    %v151 = vsel %vm140, %v148, %v121
    %v152 = vsel %vm140, %v150, %v122
    %vm153 = vcmp.lt.s32.totalorder %v132, 15
    %v154 = vsel %vm153, 1, 0
    %vm155 = vcmp.eq.s32.totalorder %v154, 1
    %v156 = vsel %vm155, %v121, 0.0
    %v157 = vsel %vm155, %v122, 0.0
    %vm158 = vcmp.ge.s32.totalorder %v132, 1
    %v159 = vsel %vm158, 1, 0
    %vm160 = vcmp.eq.s32.totalorder %v159, 1
    %163 = vrot.lane.b32.xlu0 %v151, 113
    %v164 = vpop.permute.xlu0 %163
    %165 = vrot.lane.b32.xlu0 %v152, 113
    %v166 = vpop.permute.xlu0 %165
    %v169 = vsel %vm160, %v164, 0.0
    %v170 = vsel %vm160, %v166, 0.0
    %v171 = vsub.f32 %v156, %v169
    %v172 = vsub.f32 %v157, %v170
    %v173 = vld [vmem:[#allocation7 + $0x7] sm:$0x1]
    %v174 = vld [vmem:[#allocation8 + $0x7] sm:$0x1]
    %v175 = vmul.f32 %v173, %v174
    %v176 = vrot.slane %v129, 7
    %v177 = vrot.slane %v130, 7
    %vm178 = vcmp.lt.s32.totalorder %v134, 1
    %v179 = vsel %vm178, %v176, %v177
    %v180 = vsel %vm178, %v177, %v176
    %vm181 = vcmp.eq.s32.totalorder %v134, 0
    %vm182 = vcmp.eq.s32.totalorder %v135, 0
    %v183 = vsel %vm181, 1, 0
    %v184 = vsel %vm182, 1, 0
    %vm185 = vcmp.eq.s32.totalorder %v183, 1
    %vm186 = vcmp.eq.s32.totalorder %v184, 1
    %v187 = vperm.slane %v175, 0
    %v188 = vsel %vm185, %v187, %v180
    %v189 = vsel %vm186, %v187, %v179
    %vm190 = vcmp.lt.s32.totalorder %v138, 15
    %vm191 = vcmp.lt.s32.totalorder %v139, 15
    %v192 = vsel %vm190, 1, 0
    %v193 = vsel %vm191, 1, 0
    %vm194 = vcmp.eq.s32.totalorder %v192, 1
    %vm195 = vcmp.eq.s32.totalorder %v193, 1
    %v196 = vsel %vm194, %v129, 0.0
    %v197 = vsel %vm195, %v130, 0.0
    %vm198 = vcmp.ge.s32.totalorder %v138, 1
    %vm199 = vcmp.ge.s32.totalorder %v139, 1
    %vm200 = vcmp.lt.s32.totalorder %v138, 16
    %vm201 = vcmp.lt.s32.totalorder %v139, 16
    %vm202 = vmand %vm198, %vm200
    %vm203 = vmand %vm199, %vm201
    %v204 = vsel %vm202, 1, 0
    %v205 = vsel %vm203, 1, 0
    %vm206 = vcmp.eq.s32.totalorder %v204, 1
    %vm207 = vcmp.eq.s32.totalorder %v205, 1
    %v208 = vsel %vm206, %v188, 0.0
    %v209 = vsel %vm207, %v189, 0.0
    %v210 = vsub.f32 %v196, %v208
    %v211 = vsub.f32 %v197, %v209
    %v212 = vld [vmem:[#allocation10] sm:$0xff]
    %v213 = vld [vmem:[#allocation10 + $0x8] sm:$0xff]
    %v214 = vadd.f32 %v171, %v210
    %v215 = vadd.f32 %v172, %v211
    %v216 = vsub.f32 %v212, %v214
    %v217 = vsub.f32 %v213, %v215
    %v218 = vmul.f32 %v216, %v216
    %v219 = vmul.f32 %v217, %v217
    %v220 = vsel %vm200, 1, 0
    %v221 = vsel %vm201, 1, 0
    %vm222 = vcmp.eq.s32.totalorder %v220, 1
    %vm223 = vcmp.eq.s32.totalorder %v221, 1
    %v224 = vsel %vm222, %v218, 0.0
    %v225 = vsel %vm223, %v219, 0.0
    %vm226 = vcmask 130048
    %v227 = vsel %vm226, %v224, 0.0
    %v228 = vsel %vm226, %v225, 0.0
    %v229 = vadd.f32 %v227, %v228
    %v230 = vrot.slane %v229, 4
    %v231 = vadd.f32 %v229, %v230
    %v232 = vrot.slane %v231, 2
    %v233 = vadd.f32 %v231, %v232
    %v234 = vrot.slane %v233, 1
    %v235 = vadd.f32 %v233, %v234
    %vm236 = vcmask 122880
    %237 = vst.msk [vmem:[#allocation11] sm:$0x1] %vm236, %v235
    // Predicated region
    $region42: #{tpu_custom_call.1} parent=1 // pred_check
      _
    $region43: #{tpu_custom_call.1} parent=1 // pred_check_branch
      %239 = sbr.rel (0) target = $region45
    $region44: #{tpu_custom_call.1} parent=1 // pred_region
      %241 = vsyncadd [#allocation4], 0
      %s243 = sshll.u32 [#allocation11], 4
      %s244 = int_to_ptr.vmem [resolvable:$true] %s243
      %s245 = sshll.u32 %s5, 4
      %s246 = int_to_ptr.hbm [resolvable:$true] %s245
      %248 = dma.vmem_to_hbm [thread:$0]  %s244, 16, %s246, [#allocation4]
    $region45: #{tpu_custom_call.1} parent=1 // pred_fallthru
      _
    // Predicated region
    $region46: #{tpu_custom_call.1} parent=1 // pred_check
      _
    $region47: #{tpu_custom_call.1} parent=1 // pred_check_branch
      %250 = sbr.rel (0) target = $region49
    $region48: #{tpu_custom_call.1} parent=1 // pred_region
      %252 = dma.done [#allocation4], 16
    $region49: #{tpu_custom_call.1} parent=1 // pred_fallthru
      _
    %253 = vsyncpa [#allocation3], 1
    %254 = vsyncpa [#allocation6], 1
    %255 = vsyncpa [#allocation9], 1
    %256 = vsyncpa [#allocation4], 1

</llo_original>
